<compile_context>
chip_gen: v5e
topology: v5e:2x2
jax: 0.10.0
libtpu: 0.0.40
codegen_flags: <defaults>
</compile_context>

<pallas_src>
import functools

import jax
import jax.numpy as jnp
from jax import lax
from jax.experimental import pallas as pl
from jax.experimental.pallas import tpu as pltpu


def _conv_block_kernel(x_ref, w0_ref, wrest_ref, vecs_ref, o_ref, *,
                       H, W, KH, KW, pad, n_layers, c_out, eps, slope):
    """Fused n_layers x (conv + per-sample LayerNorm + LeakyReLU) for one batch block.

    x_ref    : (Cin_p, B*HW)   channel-in-sublane / (sample,spatial)-in-lane input
    w0_ref   : (Cout_p, KH*KW*Cin_p)                 layer-0 folded weight
    wrest_ref: (max(1,n_layers-1), Cout_p, KH*KW*Cout_p)  folded weights, layers >= 1
    vecs_ref : (n_layers, 3*Cout_p, 1)               [bias; gamma; beta] per layer
    o_ref    : (Cout_p, B*HW)
    """
    Cout_p = o_ref.shape[0]
    BHW = x_ref.shape[1]
    HW = H * W
    B = BHW // HW

    # ---- per-tap validity masks: depend only on geometry, hoisted out of all loops.
    pos = lax.broadcasted_iota(jnp.int32, (1, BHW), 1)
    q = jnp.bitwise_and(pos, HW - 1) if (HW & (HW - 1)) == 0 else pos % HW
    ow = jnp.bitwise_and(q, W - 1) if (W & (W - 1)) == 0 else q % W
    taps = []
    for kh in range(KH):
        for kw in range(KW):
            dh, dw = kh - pad, kw - pad
            if dh == 0 and dw == 0:
                taps.append((0, None))
            else:
                # valid <=> 0 <= oh+dh < H  and  0 <= ow+dw < W ; valid positions
                # always read within their own sample, so the global roll is safe.
                row_ok = (q >= (-dh) * W) & (q < (H - dh) * W)
                col_ok = (ow >= -dw) & (ow < W - dw)
                taps.append((dh * W + dw, row_ok & col_ok))

    x = x_ref[...].astype(jnp.float32)                       # (Cin_p, B*HW)
    m = c_out * HW                                           # real (unpadded) count

    for l in range(n_layers):                                # n_layers is static
        # per-layer params loaded ONCE (hoisted out of per-sample work)
        w = (w0_ref[...] if l == 0 else wrest_ref[l - 1]).astype(jnp.float32)
        v = vecs_ref[l]                                      # (3*Cout_p, 1)
        bias = v[0:Cout_p]
        gamma = v[Cout_p:2 * Cout_p]
        beta = v[2 * Cout_p:3 * Cout_p]

        # ---- conv: im2col for the whole sample block, ONE folded MXU matmul ----
        cols = []
        for d, mask in taps:
            if mask is None:
                cols.append(x)
            else:
                cols.append(jnp.where(mask, jnp.roll(x, -d, axis=1), 0.0))
        col = jnp.concatenate(cols, axis=0)                  # (KH*KW*C, B*HW)
        y = jnp.dot(w, col, preferred_element_type=jnp.float32) + bias  # (Cout_p, B*HW)

        # ---- per-sample LayerNorm + affine + LeakyReLU ----
        # B <= 8 (capped in the wrapper) so this tiny static loop stays small;
        # HW = 256-lane slices are tile-aligned (free views in registers).
        pieces = []
        for b in range(B):
            y_b = y[:, b * HW:(b + 1) * HW]                  # (Cout_p, HW)
            r1 = jnp.sum(y_b, axis=-1, keepdims=True)        # per-channel lane reduce
            r2 = jnp.sum(y_b * y_b, axis=-1, keepdims=True)
            s = jnp.sum(r1)                                  # tiny sublane reduce
            ss = jnp.sum(r2)
            mean = s / m
            # TODO(synk): one-pass variance can cancel for large means at big HW /
            # deep stacks; switch to a mean-subtracted second pass if scaling up.
            var = jnp.maximum((ss - s * mean) / (m - 1), 0.0)
            inv = 1.0 / (jnp.sqrt(var) + eps)                # exact divide (tolerance)
            scale = inv * gamma                              # (Cout_p, 1)
            shift = beta - mean * scale
            z = y_b * scale + shift                          # single fused pass
            pieces.append(jnp.where(z > 0, z, slope * z))    # LeakyReLU(0.01)
        x = pieces[0] if B == 1 else jnp.concatenate(pieces, axis=1)

    o_ref[...] = x.astype(o_ref.dtype)


def conv_block_forward(x_nchw, params, pad, eps=1e-5, slope=0.01,
                       samples_per_block=None):
    """Full ConvBlock forward (NCHW in / NCHW out) as a single fused pallas_call."""
    N, Cin, H, W = x_nchw.shape
    HW = H * W
    n_layers = len(params)

    KH, KW, _, Cout = params[0][0].shape
    # In-kernel shift/mask padding assumes a 'same'-size conv (out spatial == in).
    assert KH == KW and 2 * pad == KH - 1, "only 'same' convolutions supported"
    # TODO(synk): general pad/kernel_size (spatial size changing per repeat) not implemented.

    Cin_p = -(-Cin // 8) * 8
    Cout_p = -(-Cout // 8) * 8

    # channel-in-sublane / (sample, spatial)-in-lane layout: (Cin_p, N*HW)
    x_flat = x_nchw.reshape(N, Cin, HW)
    if Cin_p != Cin:
        x_flat = jnp.pad(x_flat, ((0, 0), (0, Cin_p - Cin), (0, 0)))
    x_lanes = jnp.transpose(x_flat, (1, 0, 2)).reshape(Cin_p, N * HW)

    # ---- fold / pad / stack parameters (few, lane-dense arrays) ----
    w_folded, vecs = [], []
    for li, (w_hwio, bias, gamma, beta) in enumerate(params):
        kh, kw, ci, co = w_hwio.shape
        assert (kh, kw) == (KH, KW) and co == Cout
        ci_p = Cin_p if li == 0 else Cout_p
        w_pad = jnp.pad(w_hwio, ((0, 0), (0, 0), (0, ci_p - ci), (0, Cout_p - co)))
        # (KH,KW,Ci,Co) -> (Cout_p, KH*KW*Ci_p): tap-major then channel, matching
        # the in-kernel im2col row order.
        w_folded.append(jnp.transpose(w_pad, (3, 0, 1, 2)).reshape(Cout_p, KH * KW * ci_p))
        vecs.append(jnp.concatenate([
            jnp.pad(bias, (0, Cout_p - co)),
            jnp.pad(gamma, (0, Cout_p - co)),
            jnp.pad(beta, (0, Cout_p - co))]).reshape(3 * Cout_p, 1))
    w0 = w_folded[0]
    if n_layers > 1:
        w_rest = jnp.stack(w_folded[1:])               # (n_layers-1, Cout_p, KH*KW*Cout_p)
    else:
        w_rest = jnp.zeros((1, Cout_p, KH * KW * Cout_p), jnp.float32)  # unused dummy
    vecs = jnp.stack(vecs)                             # (n_layers, 3*Cout_p, 1)

    # ---- block size: divisor of N, capped at 8, aiming for >=4 grid steps ----
    if samples_per_block is None:
        cap = min(8, max(1, N // 4))
        samples_per_block = max(d for d in range(1, cap + 1) if N % d == 0)
    B = samples_per_block
    assert N % B == 0, "samples_per_block must divide the batch"
    grid = (N // B,)

    # ---- VMEM accounting (sized against v7x's 64 MiB physical VMEM) ----
    c_max = max(Cin_p, Cout_p)
    est = (2 * B * HW * 4 * (Cin_p + Cout_p)                   # double-buffered in/out blocks
           + 2 * 4 * (w0.size + w_rest.size + vecs.size)       # params (double-buffered)
           + B * HW * 4 * (KH * KW * c_max + 3 * Cout_p))      # live im2col + y + x
    vmem_limit = int(min(64 * 1024 * 1024, max(16 * 1024 * 1024, 2 * est)))

    kern = functools.partial(_conv_block_kernel, H=H, W=W, KH=KH, KW=KW,
                             pad=pad, n_layers=n_layers, c_out=Cout,
                             eps=eps, slope=slope)

    out_lanes = pl.pallas_call(
        kern,
        out_shape=jax.ShapeDtypeStruct((Cout_p, N * HW), x_nchw.dtype),
        grid_spec=pltpu.PrefetchScalarGridSpec(
            num_scalar_prefetch=0,
            grid=grid,
            in_specs=[
                pl.BlockSpec((Cin_p, B * HW), lambda i: (0, i)),
                # grid-invariant params: full-array blocks, constant index_map
                pl.BlockSpec(w0.shape, lambda i: (0, 0)),
                pl.BlockSpec(w_rest.shape, lambda i: (0, 0, 0)),
                pl.BlockSpec(vecs.shape, lambda i: (0, 0, 0)),
            ],
            out_specs=pl.BlockSpec((Cout_p, B * HW), lambda i: (0, i)),
        ),
        compiler_params=pltpu.CompilerParams(
            dimension_semantics=("parallel",),
            vmem_limit_bytes=vmem_limit,
        ),
    )(x_lanes, w0, w_rest, vecs)

    out = out_lanes.reshape(Cout_p, N, HW)[:Cout]
    return jnp.transpose(out, (1, 0, 2)).reshape(N, Cout, H, W)


def init_conv_block_params(key, n_repeats, c_in, c_out, kernel_size):
    """Deterministic synthetic params. Conv weights stored as HWIO."""
    params = []
    ci = c_in
    for _ in range(n_repeats):
        key, kw_, kb_, kg_ = jax.random.split(key, 4)
        fan_in = ci * kernel_size * kernel_size
        w = jax.random.normal(kw_, (kernel_size, kernel_size, ci, c_out),
                              jnp.float32) * (1.0 / jnp.sqrt(fan_in))
        b = jax.random.normal(kb_, (c_out,), jnp.float32) * 0.1
        gamma = jax.random.uniform(kg_, (c_out,), jnp.float32)   # ~ torch .uniform_()
        beta = jnp.zeros((c_out,), jnp.float32)
        params.append((w, b, gamma, beta))
        ci = c_out
    return params


# ---------------- pure-JAX reference (for correctness check) ----------------
def _reference_forward(x_nchw, params, pad, eps=1e-5, slope=0.01):
    x = x_nchw
    for (w_hwio, b, gamma, beta) in params:
        y = lax.conv_general_dilated(
            x, w_hwio, window_strides=(1, 1),
            padding=((pad, pad), (pad, pad)),
            dimension_numbers=("NCHW", "HWIO", "NCHW"))
        y = y + b.reshape(1, -1, 1, 1)
        flat = y.reshape(y.shape[0], -1)
        mean = flat.mean(axis=1).reshape(-1, 1, 1, 1)
        std = jnp.std(flat, axis=1, ddof=1).reshape(-1, 1, 1, 1)
        y = (y - mean) / (std + eps)
        y = y * gamma.reshape(1, -1, 1, 1) + beta.reshape(1, -1, 1, 1)
        x = jnp.where(y > 0, y, slope * y)
    return x


if __name__ == "__main__":
    # Shapes consistent with ConvBlock(n_repeats=2, c_in=4, c_out=8, k=3, pad=1)
    N, C_IN, HGT, WID = 2, 4, 16, 16
    N_REPEATS, C_OUT, KSIZE, PAD = 2, 8, 3, 1

    key = jax.random.PRNGKey(0)
    kx, kp = jax.random.split(key)
    x = jax.random.normal(kx, (N, C_IN, HGT, WID), jnp.float32)   # NCHW like PyTorch

    params = init_conv_block_params(kp, N_REPEATS, C_OUT, KSIZE, KSIZE) \
        if False else init_conv_block_params(kp, N_REPEATS, C_IN, C_OUT, KSIZE)

    fwd = jax.jit(functools.partial(conv_block_forward, pad=PAD))
    out = jax.block_until_ready(fwd(x, params))

    ref = jax.block_until_ready(_reference_forward(x, params, PAD))
    assert out.shape == (N, C_OUT, HGT, WID), out.shape
    max_err = float(jnp.max(jnp.abs(out - ref)))
    assert jnp.allclose(out, ref, atol=2e-4, rtol=2e-4), max_err

    print("KERNEL_OK")
</pallas_src>

<mosaic_0001>
module attributes {stable_mosaic.version = 11 : i64} {
  func.func @_conv_block_kernel(%arg0: i32, %arg1: memref<8x256xf32, #tpu.memory_space<vmem>>, %arg2: memref<8x72xf32, #tpu.memory_space<vmem>>, %arg3: memref<1x8x72xf32, #tpu.memory_space<vmem>>, %arg4: memref<2x24x1xf32, #tpu.memory_space<vmem>>, %arg5: memref<8x256xf32, #tpu.memory_space<vmem>>) attributes {dimension_semantics = [#tpu.dimension_semantics<parallel>], iteration_bounds = array<i64: 2>, scalar_prefetch = 0 : i64, scratch_operands = 0 : i64, tpu.core_type = #tpu.core_type<tc>, window_params = [{transform_indices = @transform_0, window_bounds = array<i64: 8, 256>}, {pipeline_mode = #tpu.pipeline_mode<synchronous>, transform_indices = @transform_1, window_bounds = array<i64: 8, 72>}, {pipeline_mode = #tpu.pipeline_mode<synchronous>, transform_indices = @transform_2, window_bounds = array<i64: 1, 8, 72>}, {pipeline_mode = #tpu.pipeline_mode<synchronous>, transform_indices = @transform_3, window_bounds = array<i64: 2, 24, 1>}, {transform_indices = @transform_4, window_bounds = array<i64: 8, 256>}]} {
    %0 = tpu.iota {dimensions = array<i32: 1>} : vector<1x256xi32>
    %c255_i32 = arith.constant 255 : i32
    %1 = vector.broadcast %c255_i32 : i32 to vector<1x256xi32>
    %2 = arith.andi %0, %1 : vector<1x256xi32>
    %c15_i32 = arith.constant 15 : i32
    %3 = vector.broadcast %c15_i32 : i32 to vector<1x256xi32>
    %4 = arith.andi %2, %3 : vector<1x256xi32>
    %c16_i32 = arith.constant 16 : i32
    %5 = vector.broadcast %c16_i32 : i32 to vector<1x256xi32>
    %6 = arith.cmpi sge, %2, %5 : vector<1x256xi32>
    %c272_i32 = arith.constant 272 : i32
    %7 = vector.broadcast %c272_i32 : i32 to vector<1x256xi32>
    %8 = arith.cmpi slt, %2, %7 : vector<1x256xi32>
    %9 = arith.andi %6, %8 : vector<1x256xi1>
    %c1_i32 = arith.constant 1 : i32
    %10 = vector.broadcast %c1_i32 : i32 to vector<1x256xi32>
    %11 = arith.cmpi sge, %4, %10 : vector<1x256xi32>
    %c17_i32 = arith.constant 17 : i32
    %12 = vector.broadcast %c17_i32 : i32 to vector<1x256xi32>
    %13 = arith.cmpi slt, %4, %12 : vector<1x256xi32>
    %14 = arith.andi %11, %13 : vector<1x256xi1>
    %15 = arith.andi %9, %14 : vector<1x256xi1>
    %c16_i32_0 = arith.constant 16 : i32
    %16 = vector.broadcast %c16_i32_0 : i32 to vector<1x256xi32>
    %17 = arith.cmpi sge, %2, %16 : vector<1x256xi32>
    %c272_i32_1 = arith.constant 272 : i32
    %18 = vector.broadcast %c272_i32_1 : i32 to vector<1x256xi32>
    %19 = arith.cmpi slt, %2, %18 : vector<1x256xi32>
    %20 = arith.andi %17, %19 : vector<1x256xi1>
    %c0_i32 = arith.constant 0 : i32
    %21 = vector.broadcast %c0_i32 : i32 to vector<1x256xi32>
    %22 = arith.cmpi sge, %4, %21 : vector<1x256xi32>
    %c16_i32_2 = arith.constant 16 : i32
    %23 = vector.broadcast %c16_i32_2 : i32 to vector<1x256xi32>
    %24 = arith.cmpi slt, %4, %23 : vector<1x256xi32>
    %25 = arith.andi %22, %24 : vector<1x256xi1>
    %26 = arith.andi %20, %25 : vector<1x256xi1>
    %c16_i32_3 = arith.constant 16 : i32
    %27 = vector.broadcast %c16_i32_3 : i32 to vector<1x256xi32>
    %28 = arith.cmpi sge, %2, %27 : vector<1x256xi32>
    %c272_i32_4 = arith.constant 272 : i32
    %29 = vector.broadcast %c272_i32_4 : i32 to vector<1x256xi32>
    %30 = arith.cmpi slt, %2, %29 : vector<1x256xi32>
    %31 = arith.andi %28, %30 : vector<1x256xi1>
    %c-1_i32 = arith.constant -1 : i32
    %32 = vector.broadcast %c-1_i32 : i32 to vector<1x256xi32>
    %33 = arith.cmpi sge, %4, %32 : vector<1x256xi32>
    %c15_i32_5 = arith.constant 15 : i32
    %34 = vector.broadcast %c15_i32_5 : i32 to vector<1x256xi32>
    %35 = arith.cmpi slt, %4, %34 : vector<1x256xi32>
    %36 = arith.andi %33, %35 : vector<1x256xi1>
    %37 = arith.andi %31, %36 : vector<1x256xi1>
    %c0_i32_6 = arith.constant 0 : i32
    %38 = vector.broadcast %c0_i32_6 : i32 to vector<1x256xi32>
    %39 = arith.cmpi sge, %2, %38 : vector<1x256xi32>
    %c256_i32 = arith.constant 256 : i32
    %40 = vector.broadcast %c256_i32 : i32 to vector<1x256xi32>
    %41 = arith.cmpi slt, %2, %40 : vector<1x256xi32>
    %42 = arith.andi %39, %41 : vector<1x256xi1>
    %c1_i32_7 = arith.constant 1 : i32
    %43 = vector.broadcast %c1_i32_7 : i32 to vector<1x256xi32>
    %44 = arith.cmpi sge, %4, %43 : vector<1x256xi32>
    %c17_i32_8 = arith.constant 17 : i32
    %45 = vector.broadcast %c17_i32_8 : i32 to vector<1x256xi32>
    %46 = arith.cmpi slt, %4, %45 : vector<1x256xi32>
    %47 = arith.andi %44, %46 : vector<1x256xi1>
    %48 = arith.andi %42, %47 : vector<1x256xi1>
    %c0_i32_9 = arith.constant 0 : i32
    %49 = vector.broadcast %c0_i32_9 : i32 to vector<1x256xi32>
    %50 = arith.cmpi sge, %2, %49 : vector<1x256xi32>
    %c256_i32_10 = arith.constant 256 : i32
    %51 = vector.broadcast %c256_i32_10 : i32 to vector<1x256xi32>
    %52 = arith.cmpi slt, %2, %51 : vector<1x256xi32>
    %53 = arith.andi %50, %52 : vector<1x256xi1>
    %c-1_i32_11 = arith.constant -1 : i32
    %54 = vector.broadcast %c-1_i32_11 : i32 to vector<1x256xi32>
    %55 = arith.cmpi sge, %4, %54 : vector<1x256xi32>
    %c15_i32_12 = arith.constant 15 : i32
    %56 = vector.broadcast %c15_i32_12 : i32 to vector<1x256xi32>
    %57 = arith.cmpi slt, %4, %56 : vector<1x256xi32>
    %58 = arith.andi %55, %57 : vector<1x256xi1>
    %59 = arith.andi %53, %58 : vector<1x256xi1>
    %c-16_i32 = arith.constant -16 : i32
    %60 = vector.broadcast %c-16_i32 : i32 to vector<1x256xi32>
    %61 = arith.cmpi sge, %2, %60 : vector<1x256xi32>
    %c240_i32 = arith.constant 240 : i32
    %62 = vector.broadcast %c240_i32 : i32 to vector<1x256xi32>
    %63 = arith.cmpi slt, %2, %62 : vector<1x256xi32>
    %64 = arith.andi %61, %63 : vector<1x256xi1>
    %c1_i32_13 = arith.constant 1 : i32
    %65 = vector.broadcast %c1_i32_13 : i32 to vector<1x256xi32>
    %66 = arith.cmpi sge, %4, %65 : vector<1x256xi32>
    %c17_i32_14 = arith.constant 17 : i32
    %67 = vector.broadcast %c17_i32_14 : i32 to vector<1x256xi32>
    %68 = arith.cmpi slt, %4, %67 : vector<1x256xi32>
    %69 = arith.andi %66, %68 : vector<1x256xi1>
    %70 = arith.andi %64, %69 : vector<1x256xi1>
    %c-16_i32_15 = arith.constant -16 : i32
    %71 = vector.broadcast %c-16_i32_15 : i32 to vector<1x256xi32>
    %72 = arith.cmpi sge, %2, %71 : vector<1x256xi32>
    %c240_i32_16 = arith.constant 240 : i32
    %73 = vector.broadcast %c240_i32_16 : i32 to vector<1x256xi32>
    %74 = arith.cmpi slt, %2, %73 : vector<1x256xi32>
    %75 = arith.andi %72, %74 : vector<1x256xi1>
    %c0_i32_17 = arith.constant 0 : i32
    %76 = vector.broadcast %c0_i32_17 : i32 to vector<1x256xi32>
    %77 = arith.cmpi sge, %4, %76 : vector<1x256xi32>
    %c16_i32_18 = arith.constant 16 : i32
    %78 = vector.broadcast %c16_i32_18 : i32 to vector<1x256xi32>
    %79 = arith.cmpi slt, %4, %78 : vector<1x256xi32>
    %80 = arith.andi %77, %79 : vector<1x256xi1>
    %81 = arith.andi %75, %80 : vector<1x256xi1>
    %c-16_i32_19 = arith.constant -16 : i32
    %82 = vector.broadcast %c-16_i32_19 : i32 to vector<1x256xi32>
    %83 = arith.cmpi sge, %2, %82 : vector<1x256xi32>
    %c240_i32_20 = arith.constant 240 : i32
    %84 = vector.broadcast %c240_i32_20 : i32 to vector<1x256xi32>
    %85 = arith.cmpi slt, %2, %84 : vector<1x256xi32>
    %86 = arith.andi %83, %85 : vector<1x256xi1>
    %c-1_i32_21 = arith.constant -1 : i32
    %87 = vector.broadcast %c-1_i32_21 : i32 to vector<1x256xi32>
    %88 = arith.cmpi sge, %4, %87 : vector<1x256xi32>
    %c15_i32_22 = arith.constant 15 : i32
    %89 = vector.broadcast %c15_i32_22 : i32 to vector<1x256xi32>
    %90 = arith.cmpi slt, %4, %89 : vector<1x256xi32>
    %91 = arith.andi %88, %90 : vector<1x256xi1>
    %92 = arith.andi %86, %91 : vector<1x256xi1>
    %c0 = arith.constant 0 : index
    %c0_23 = arith.constant 0 : index
    %93 = vector.load %arg1[%c0, %c0_23] : memref<8x256xf32, #tpu.memory_space<vmem>>, vector<8x256xf32>
    %c0_24 = arith.constant 0 : index
    %c0_25 = arith.constant 0 : index
    %94 = vector.load %arg2[%c0_24, %c0_25] : memref<8x72xf32, #tpu.memory_space<vmem>>, vector<8x72xf32>
    %c0_26 = arith.constant 0 : index
    %c0_27 = arith.constant 0 : index
    %c0_28 = arith.constant 0 : index
    %95 = vector.load %arg4[%c0_26, %c0_27, %c0_28] : memref<2x24x1xf32, #tpu.memory_space<vmem>>, vector<1x24x1xf32>
    %96 = vector.shape_cast %95 : vector<1x24x1xf32> to vector<24x1xf32>
    %97 = vector.extract_strided_slice %96 {offsets = [0, 0], sizes = [8, 1], strides = [1, 1]} : vector<24x1xf32> to vector<8x1xf32>
    %98 = vector.extract_strided_slice %96 {offsets = [8, 0], sizes = [8, 1], strides = [1, 1]} : vector<24x1xf32> to vector<8x1xf32>
    %99 = vector.extract_strided_slice %96 {offsets = [16, 0], sizes = [8, 1], strides = [1, 1]} : vector<24x1xf32> to vector<8x1xf32>
    %100 = vector.extract_strided_slice %93 {offsets = [0, 239], sizes = [8, 17], strides = [1, 1]} : vector<8x256xf32> to vector<8x17xf32>
    %101 = vector.extract_strided_slice %93 {offsets = [0, 0], sizes = [8, 239], strides = [1, 1]} : vector<8x256xf32> to vector<8x239xf32>
    %102 = tpu.concatenate %100, %101 in 1 : vector<8x17xf32>, vector<8x239xf32> -> vector<8x256xf32>
    %cst = arith.constant 0.000000e+00 : f32
    %103 = vector.shape_cast %15 : vector<1x256xi1> to vector<1x256xi1>
    %104 = vector.broadcast %103 : vector<1x256xi1> to vector<8x256xi1>
    %105 = vector.broadcast %cst : f32 to vector<8x256xf32>
    %106 = arith.select %104, %102, %105 : vector<8x256xi1>, vector<8x256xf32>
    %107 = vector.extract_strided_slice %93 {offsets = [0, 240], sizes = [8, 16], strides = [1, 1]} : vector<8x256xf32> to vector<8x16xf32>
    %108 = vector.extract_strided_slice %93 {offsets = [0, 0], sizes = [8, 240], strides = [1, 1]} : vector<8x256xf32> to vector<8x240xf32>
    %109 = tpu.concatenate %107, %108 in 1 : vector<8x16xf32>, vector<8x240xf32> -> vector<8x256xf32>
    %cst_29 = arith.constant 0.000000e+00 : f32
    %110 = vector.shape_cast %26 : vector<1x256xi1> to vector<1x256xi1>
    %111 = vector.broadcast %110 : vector<1x256xi1> to vector<8x256xi1>
    %112 = vector.broadcast %cst_29 : f32 to vector<8x256xf32>
    %113 = arith.select %111, %109, %112 : vector<8x256xi1>, vector<8x256xf32>
    %114 = vector.extract_strided_slice %93 {offsets = [0, 241], sizes = [8, 15], strides = [1, 1]} : vector<8x256xf32> to vector<8x15xf32>
    %115 = vector.extract_strided_slice %93 {offsets = [0, 0], sizes = [8, 241], strides = [1, 1]} : vector<8x256xf32> to vector<8x241xf32>
    %116 = tpu.concatenate %114, %115 in 1 : vector<8x15xf32>, vector<8x241xf32> -> vector<8x256xf32>
    %cst_30 = arith.constant 0.000000e+00 : f32
    %117 = vector.shape_cast %37 : vector<1x256xi1> to vector<1x256xi1>
    %118 = vector.broadcast %117 : vector<1x256xi1> to vector<8x256xi1>
    %119 = vector.broadcast %cst_30 : f32 to vector<8x256xf32>
    %120 = arith.select %118, %116, %119 : vector<8x256xi1>, vector<8x256xf32>
    %121 = vector.extract_strided_slice %93 {offsets = [0, 255], sizes = [8, 1], strides = [1, 1]} : vector<8x256xf32> to vector<8x1xf32>
    %122 = vector.extract_strided_slice %93 {offsets = [0, 0], sizes = [8, 255], strides = [1, 1]} : vector<8x256xf32> to vector<8x255xf32>
    %123 = tpu.concatenate %121, %122 in 1 : vector<8x1xf32>, vector<8x255xf32> -> vector<8x256xf32>
    %cst_31 = arith.constant 0.000000e+00 : f32
    %124 = vector.shape_cast %48 : vector<1x256xi1> to vector<1x256xi1>
    %125 = vector.broadcast %124 : vector<1x256xi1> to vector<8x256xi1>
    %126 = vector.broadcast %cst_31 : f32 to vector<8x256xf32>
    %127 = arith.select %125, %123, %126 : vector<8x256xi1>, vector<8x256xf32>
    %128 = vector.extract_strided_slice %93 {offsets = [0, 1], sizes = [8, 255], strides = [1, 1]} : vector<8x256xf32> to vector<8x255xf32>
    %129 = vector.extract_strided_slice %93 {offsets = [0, 0], sizes = [8, 1], strides = [1, 1]} : vector<8x256xf32> to vector<8x1xf32>
    %130 = tpu.concatenate %128, %129 in 1 : vector<8x255xf32>, vector<8x1xf32> -> vector<8x256xf32>
    %cst_32 = arith.constant 0.000000e+00 : f32
    %131 = vector.shape_cast %59 : vector<1x256xi1> to vector<1x256xi1>
    %132 = vector.broadcast %131 : vector<1x256xi1> to vector<8x256xi1>
    %133 = vector.broadcast %cst_32 : f32 to vector<8x256xf32>
    %134 = arith.select %132, %130, %133 : vector<8x256xi1>, vector<8x256xf32>
    %135 = vector.extract_strided_slice %93 {offsets = [0, 15], sizes = [8, 241], strides = [1, 1]} : vector<8x256xf32> to vector<8x241xf32>
    %136 = vector.extract_strided_slice %93 {offsets = [0, 0], sizes = [8, 15], strides = [1, 1]} : vector<8x256xf32> to vector<8x15xf32>
    %137 = tpu.concatenate %135, %136 in 1 : vector<8x241xf32>, vector<8x15xf32> -> vector<8x256xf32>
    %cst_33 = arith.constant 0.000000e+00 : f32
    %138 = vector.shape_cast %70 : vector<1x256xi1> to vector<1x256xi1>
    %139 = vector.broadcast %138 : vector<1x256xi1> to vector<8x256xi1>
    %140 = vector.broadcast %cst_33 : f32 to vector<8x256xf32>
    %141 = arith.select %139, %137, %140 : vector<8x256xi1>, vector<8x256xf32>
    %142 = vector.extract_strided_slice %93 {offsets = [0, 16], sizes = [8, 240], strides = [1, 1]} : vector<8x256xf32> to vector<8x240xf32>
    %143 = vector.extract_strided_slice %93 {offsets = [0, 0], sizes = [8, 16], strides = [1, 1]} : vector<8x256xf32> to vector<8x16xf32>
    %144 = tpu.concatenate %142, %143 in 1 : vector<8x240xf32>, vector<8x16xf32> -> vector<8x256xf32>
    %cst_34 = arith.constant 0.000000e+00 : f32
    %145 = vector.shape_cast %81 : vector<1x256xi1> to vector<1x256xi1>
    %146 = vector.broadcast %145 : vector<1x256xi1> to vector<8x256xi1>
    %147 = vector.broadcast %cst_34 : f32 to vector<8x256xf32>
    %148 = arith.select %146, %144, %147 : vector<8x256xi1>, vector<8x256xf32>
    %149 = vector.extract_strided_slice %93 {offsets = [0, 17], sizes = [8, 239], strides = [1, 1]} : vector<8x256xf32> to vector<8x239xf32>
    %150 = vector.extract_strided_slice %93 {offsets = [0, 0], sizes = [8, 17], strides = [1, 1]} : vector<8x256xf32> to vector<8x17xf32>
    %151 = tpu.concatenate %149, %150 in 1 : vector<8x239xf32>, vector<8x17xf32> -> vector<8x256xf32>
    %cst_35 = arith.constant 0.000000e+00 : f32
    %152 = vector.shape_cast %92 : vector<1x256xi1> to vector<1x256xi1>
    %153 = vector.broadcast %152 : vector<1x256xi1> to vector<8x256xi1>
    %154 = vector.broadcast %cst_35 : f32 to vector<8x256xf32>
    %155 = arith.select %153, %151, %154 : vector<8x256xi1>, vector<8x256xf32>
    %156 = tpu.concatenate %106, %113, %120, %127, %93, %134, %141, %148, %155 in 0 : vector<8x256xf32>, vector<8x256xf32>, vector<8x256xf32>, vector<8x256xf32>, vector<8x256xf32>, vector<8x256xf32>, vector<8x256xf32>, vector<8x256xf32>, vector<8x256xf32> -> vector<72x256xf32>
    %cst_36 = arith.constant dense<0.000000e+00> : vector<8x256xf32>
    %157 = tpu.matmul %94, %156, %cst_36 {dimension_numbers = #tpu.dot_dimension_numbers<[1], [0], [0], [1], [0, 0, 1, 1], [], []>} : vector<8x72xf32>, vector<72x256xf32>, vector<8x256xf32> -> vector<8x256xf32>
    %158 = vector.broadcast %97 : vector<8x1xf32> to vector<8x256xf32>
    %159 = arith.addf %157, %158 : vector<8x256xf32>
    %cst_37 = arith.constant dense<0.000000e+00> : vector<8xf32>
    %160 = vector.multi_reduction <add>, %159, %cst_37 [1] : vector<8x256xf32> to vector<8xf32>
    %161 = vector.shape_cast %160 : vector<8xf32> to vector<8x1xf32>
    %162 = arith.mulf %159, %159 : vector<8x256xf32>
    %cst_38 = arith.constant dense<0.000000e+00> : vector<8xf32>
    %163 = vector.multi_reduction <add>, %162, %cst_38 [1] : vector<8x256xf32> to vector<8xf32>
    %164 = vector.shape_cast %163 : vector<8xf32> to vector<8x1xf32>
    %165 = vector.shape_cast %161 : vector<8x1xf32> to vector<1x8x1xf32>
    %cst_39 = arith.constant dense<0.000000e+00> : vector<1xf32>
    %166 = vector.multi_reduction <add>, %165, %cst_39 [1, 2] : vector<1x8x1xf32> to vector<1xf32>
    %167 = vector.shape_cast %166 : vector<1xf32> to vector<1x1x1xf32>
    %168 = vector.extract %167[0, 0, 0] : f32 from vector<1x1x1xf32>
    %169 = vector.shape_cast %164 : vector<8x1xf32> to vector<1x8x1xf32>
    %cst_40 = arith.constant dense<0.000000e+00> : vector<1xf32>
    %170 = vector.multi_reduction <add>, %169, %cst_40 [1, 2] : vector<1x8x1xf32> to vector<1xf32>
    %171 = vector.shape_cast %170 : vector<1xf32> to vector<1x1x1xf32>
    %172 = vector.extract %171[0, 0, 0] : f32 from vector<1x1x1xf32>
    %cst_41 = arith.constant 2.048000e+03 : f32
    %173 = arith.divf %168, %cst_41 : f32
    %174 = arith.mulf %168, %173 : f32
    %175 = arith.subf %172, %174 : f32
    %cst_42 = arith.constant 2.047000e+03 : f32
    %176 = arith.divf %175, %cst_42 : f32
    %cst_43 = arith.constant 0.000000e+00 : f32
    %177 = arith.maximumf %176, %cst_43 : f32
    %178 = math.sqrt %177 : f32
    %cst_44 = arith.constant 9.99999974E-6 : f32
    %179 = arith.addf %178, %cst_44 : f32
    %cst_45 = arith.constant 1.000000e+00 : f32
    %180 = arith.divf %cst_45, %179 : f32
    %181 = vector.broadcast %180 : f32 to vector<8x1xf32>
    %182 = arith.mulf %181, %98 : vector<8x1xf32>
    %183 = vector.broadcast %173 : f32 to vector<8x1xf32>
    %184 = arith.mulf %183, %182 : vector<8x1xf32>
    %185 = arith.subf %99, %184 : vector<8x1xf32>
    %186 = vector.broadcast %182 : vector<8x1xf32> to vector<8x256xf32>
    %187 = arith.mulf %159, %186 : vector<8x256xf32>
    %188 = vector.broadcast %185 : vector<8x1xf32> to vector<8x256xf32>
    %189 = arith.addf %187, %188 : vector<8x256xf32>
    %cst_46 = arith.constant 0.000000e+00 : f32
    %190 = vector.broadcast %cst_46 : f32 to vector<8x256xf32>
    %191 = arith.cmpf ogt, %189, %190 : vector<8x256xf32>
    %cst_47 = arith.constant 0.00999999977 : f32
    %192 = vector.broadcast %cst_47 : f32 to vector<8x256xf32>
    %193 = arith.mulf %192, %189 : vector<8x256xf32>
    %194 = arith.select %191, %189, %193 : vector<8x256xi1>, vector<8x256xf32>
    %c0_48 = arith.constant 0 : index
    %c0_49 = arith.constant 0 : index
    %c0_50 = arith.constant 0 : index
    %195 = vector.load %arg3[%c0_48, %c0_49, %c0_50] : memref<1x8x72xf32, #tpu.memory_space<vmem>>, vector<1x8x72xf32>
    %196 = vector.shape_cast %195 : vector<1x8x72xf32> to vector<8x72xf32>
    %c1 = arith.constant 1 : index
    %c0_51 = arith.constant 0 : index
    %c0_52 = arith.constant 0 : index
    %197 = vector.load %arg4[%c1, %c0_51, %c0_52] : memref<2x24x1xf32, #tpu.memory_space<vmem>>, vector<1x24x1xf32>
    %198 = vector.shape_cast %197 : vector<1x24x1xf32> to vector<24x1xf32>
    %199 = vector.extract_strided_slice %198 {offsets = [0, 0], sizes = [8, 1], strides = [1, 1]} : vector<24x1xf32> to vector<8x1xf32>
    %200 = vector.extract_strided_slice %198 {offsets = [8, 0], sizes = [8, 1], strides = [1, 1]} : vector<24x1xf32> to vector<8x1xf32>
    %201 = vector.extract_strided_slice %198 {offsets = [16, 0], sizes = [8, 1], strides = [1, 1]} : vector<24x1xf32> to vector<8x1xf32>
    %202 = vector.extract_strided_slice %194 {offsets = [0, 239], sizes = [8, 17], strides = [1, 1]} : vector<8x256xf32> to vector<8x17xf32>
    %203 = vector.extract_strided_slice %194 {offsets = [0, 0], sizes = [8, 239], strides = [1, 1]} : vector<8x256xf32> to vector<8x239xf32>
    %204 = tpu.concatenate %202, %203 in 1 : vector<8x17xf32>, vector<8x239xf32> -> vector<8x256xf32>
    %cst_53 = arith.constant 0.000000e+00 : f32
    %205 = vector.shape_cast %15 : vector<1x256xi1> to vector<1x256xi1>
    %206 = vector.broadcast %205 : vector<1x256xi1> to vector<8x256xi1>
    %207 = vector.broadcast %cst_53 : f32 to vector<8x256xf32>
    %208 = arith.select %206, %204, %207 : vector<8x256xi1>, vector<8x256xf32>
    %209 = vector.extract_strided_slice %194 {offsets = [0, 240], sizes = [8, 16], strides = [1, 1]} : vector<8x256xf32> to vector<8x16xf32>
    %210 = vector.extract_strided_slice %194 {offsets = [0, 0], sizes = [8, 240], strides = [1, 1]} : vector<8x256xf32> to vector<8x240xf32>
    %211 = tpu.concatenate %209, %210 in 1 : vector<8x16xf32>, vector<8x240xf32> -> vector<8x256xf32>
    %cst_54 = arith.constant 0.000000e+00 : f32
    %212 = vector.shape_cast %26 : vector<1x256xi1> to vector<1x256xi1>
    %213 = vector.broadcast %212 : vector<1x256xi1> to vector<8x256xi1>
    %214 = vector.broadcast %cst_54 : f32 to vector<8x256xf32>
    %215 = arith.select %213, %211, %214 : vector<8x256xi1>, vector<8x256xf32>
    %216 = vector.extract_strided_slice %194 {offsets = [0, 241], sizes = [8, 15], strides = [1, 1]} : vector<8x256xf32> to vector<8x15xf32>
    %217 = vector.extract_strided_slice %194 {offsets = [0, 0], sizes = [8, 241], strides = [1, 1]} : vector<8x256xf32> to vector<8x241xf32>
    %218 = tpu.concatenate %216, %217 in 1 : vector<8x15xf32>, vector<8x241xf32> -> vector<8x256xf32>
    %cst_55 = arith.constant 0.000000e+00 : f32
    %219 = vector.shape_cast %37 : vector<1x256xi1> to vector<1x256xi1>
    %220 = vector.broadcast %219 : vector<1x256xi1> to vector<8x256xi1>
    %221 = vector.broadcast %cst_55 : f32 to vector<8x256xf32>
    %222 = arith.select %220, %218, %221 : vector<8x256xi1>, vector<8x256xf32>
    %223 = vector.extract_strided_slice %194 {offsets = [0, 255], sizes = [8, 1], strides = [1, 1]} : vector<8x256xf32> to vector<8x1xf32>
    %224 = vector.extract_strided_slice %194 {offsets = [0, 0], sizes = [8, 255], strides = [1, 1]} : vector<8x256xf32> to vector<8x255xf32>
    %225 = tpu.concatenate %223, %224 in 1 : vector<8x1xf32>, vector<8x255xf32> -> vector<8x256xf32>
    %cst_56 = arith.constant 0.000000e+00 : f32
    %226 = vector.shape_cast %48 : vector<1x256xi1> to vector<1x256xi1>
    %227 = vector.broadcast %226 : vector<1x256xi1> to vector<8x256xi1>
    %228 = vector.broadcast %cst_56 : f32 to vector<8x256xf32>
    %229 = arith.select %227, %225, %228 : vector<8x256xi1>, vector<8x256xf32>
    %230 = vector.extract_strided_slice %194 {offsets = [0, 1], sizes = [8, 255], strides = [1, 1]} : vector<8x256xf32> to vector<8x255xf32>
    %231 = vector.extract_strided_slice %194 {offsets = [0, 0], sizes = [8, 1], strides = [1, 1]} : vector<8x256xf32> to vector<8x1xf32>
    %232 = tpu.concatenate %230, %231 in 1 : vector<8x255xf32>, vector<8x1xf32> -> vector<8x256xf32>
    %cst_57 = arith.constant 0.000000e+00 : f32
    %233 = vector.shape_cast %59 : vector<1x256xi1> to vector<1x256xi1>
    %234 = vector.broadcast %233 : vector<1x256xi1> to vector<8x256xi1>
    %235 = vector.broadcast %cst_57 : f32 to vector<8x256xf32>
    %236 = arith.select %234, %232, %235 : vector<8x256xi1>, vector<8x256xf32>
    %237 = vector.extract_strided_slice %194 {offsets = [0, 15], sizes = [8, 241], strides = [1, 1]} : vector<8x256xf32> to vector<8x241xf32>
    %238 = vector.extract_strided_slice %194 {offsets = [0, 0], sizes = [8, 15], strides = [1, 1]} : vector<8x256xf32> to vector<8x15xf32>
    %239 = tpu.concatenate %237, %238 in 1 : vector<8x241xf32>, vector<8x15xf32> -> vector<8x256xf32>
    %cst_58 = arith.constant 0.000000e+00 : f32
    %240 = vector.shape_cast %70 : vector<1x256xi1> to vector<1x256xi1>
    %241 = vector.broadcast %240 : vector<1x256xi1> to vector<8x256xi1>
    %242 = vector.broadcast %cst_58 : f32 to vector<8x256xf32>
    %243 = arith.select %241, %239, %242 : vector<8x256xi1>, vector<8x256xf32>
    %244 = vector.extract_strided_slice %194 {offsets = [0, 16], sizes = [8, 240], strides = [1, 1]} : vector<8x256xf32> to vector<8x240xf32>
    %245 = vector.extract_strided_slice %194 {offsets = [0, 0], sizes = [8, 16], strides = [1, 1]} : vector<8x256xf32> to vector<8x16xf32>
    %246 = tpu.concatenate %244, %245 in 1 : vector<8x240xf32>, vector<8x16xf32> -> vector<8x256xf32>
    %cst_59 = arith.constant 0.000000e+00 : f32
    %247 = vector.shape_cast %81 : vector<1x256xi1> to vector<1x256xi1>
    %248 = vector.broadcast %247 : vector<1x256xi1> to vector<8x256xi1>
    %249 = vector.broadcast %cst_59 : f32 to vector<8x256xf32>
    %250 = arith.select %248, %246, %249 : vector<8x256xi1>, vector<8x256xf32>
    %251 = vector.extract_strided_slice %194 {offsets = [0, 17], sizes = [8, 239], strides = [1, 1]} : vector<8x256xf32> to vector<8x239xf32>
    %252 = vector.extract_strided_slice %194 {offsets = [0, 0], sizes = [8, 17], strides = [1, 1]} : vector<8x256xf32> to vector<8x17xf32>
    %253 = tpu.concatenate %251, %252 in 1 : vector<8x239xf32>, vector<8x17xf32> -> vector<8x256xf32>
    %cst_60 = arith.constant 0.000000e+00 : f32
    %254 = vector.shape_cast %92 : vector<1x256xi1> to vector<1x256xi1>
    %255 = vector.broadcast %254 : vector<1x256xi1> to vector<8x256xi1>
    %256 = vector.broadcast %cst_60 : f32 to vector<8x256xf32>
    %257 = arith.select %255, %253, %256 : vector<8x256xi1>, vector<8x256xf32>
    %258 = tpu.concatenate %208, %215, %222, %229, %194, %236, %243, %250, %257 in 0 : vector<8x256xf32>, vector<8x256xf32>, vector<8x256xf32>, vector<8x256xf32>, vector<8x256xf32>, vector<8x256xf32>, vector<8x256xf32>, vector<8x256xf32>, vector<8x256xf32> -> vector<72x256xf32>
    %cst_61 = arith.constant dense<0.000000e+00> : vector<8x256xf32>
    %259 = tpu.matmul %196, %258, %cst_61 {dimension_numbers = #tpu.dot_dimension_numbers<[1], [0], [0], [1], [0, 0, 1, 1], [], []>} : vector<8x72xf32>, vector<72x256xf32>, vector<8x256xf32> -> vector<8x256xf32>
    %260 = vector.broadcast %199 : vector<8x1xf32> to vector<8x256xf32>
    %261 = arith.addf %259, %260 : vector<8x256xf32>
    %cst_62 = arith.constant dense<0.000000e+00> : vector<8xf32>
    %262 = vector.multi_reduction <add>, %261, %cst_62 [1] : vector<8x256xf32> to vector<8xf32>
    %263 = vector.shape_cast %262 : vector<8xf32> to vector<8x1xf32>
    %264 = arith.mulf %261, %261 : vector<8x256xf32>
    %cst_63 = arith.constant dense<0.000000e+00> : vector<8xf32>
    %265 = vector.multi_reduction <add>, %264, %cst_63 [1] : vector<8x256xf32> to vector<8xf32>
    %266 = vector.shape_cast %265 : vector<8xf32> to vector<8x1xf32>
    %267 = vector.shape_cast %263 : vector<8x1xf32> to vector<1x8x1xf32>
    %cst_64 = arith.constant dense<0.000000e+00> : vector<1xf32>
    %268 = vector.multi_reduction <add>, %267, %cst_64 [1, 2] : vector<1x8x1xf32> to vector<1xf32>
    %269 = vector.shape_cast %268 : vector<1xf32> to vector<1x1x1xf32>
    %270 = vector.extract %269[0, 0, 0] : f32 from vector<1x1x1xf32>
    %271 = vector.shape_cast %266 : vector<8x1xf32> to vector<1x8x1xf32>
    %cst_65 = arith.constant dense<0.000000e+00> : vector<1xf32>
    %272 = vector.multi_reduction <add>, %271, %cst_65 [1, 2] : vector<1x8x1xf32> to vector<1xf32>
    %273 = vector.shape_cast %272 : vector<1xf32> to vector<1x1x1xf32>
    %274 = vector.extract %273[0, 0, 0] : f32 from vector<1x1x1xf32>
    %cst_66 = arith.constant 2.048000e+03 : f32
    %275 = arith.divf %270, %cst_66 : f32
    %276 = arith.mulf %270, %275 : f32
    %277 = arith.subf %274, %276 : f32
    %cst_67 = arith.constant 2.047000e+03 : f32
    %278 = arith.divf %277, %cst_67 : f32
    %cst_68 = arith.constant 0.000000e+00 : f32
    %279 = arith.maximumf %278, %cst_68 : f32
    %280 = math.sqrt %279 : f32
    %cst_69 = arith.constant 9.99999974E-6 : f32
    %281 = arith.addf %280, %cst_69 : f32
    %cst_70 = arith.constant 1.000000e+00 : f32
    %282 = arith.divf %cst_70, %281 : f32
    %283 = vector.broadcast %282 : f32 to vector<8x1xf32>
    %284 = arith.mulf %283, %200 : vector<8x1xf32>
    %285 = vector.broadcast %275 : f32 to vector<8x1xf32>
    %286 = arith.mulf %285, %284 : vector<8x1xf32>
    %287 = arith.subf %201, %286 : vector<8x1xf32>
    %288 = vector.broadcast %284 : vector<8x1xf32> to vector<8x256xf32>
    %289 = arith.mulf %261, %288 : vector<8x256xf32>
    %290 = vector.broadcast %287 : vector<8x1xf32> to vector<8x256xf32>
    %291 = arith.addf %289, %290 : vector<8x256xf32>
    %cst_71 = arith.constant 0.000000e+00 : f32
    %292 = vector.broadcast %cst_71 : f32 to vector<8x256xf32>
    %293 = arith.cmpf ogt, %291, %292 : vector<8x256xf32>
    %cst_72 = arith.constant 0.00999999977 : f32
    %294 = vector.broadcast %cst_72 : f32 to vector<8x256xf32>
    %295 = arith.mulf %294, %291 : vector<8x256xf32>
    %296 = arith.select %293, %291, %295 : vector<8x256xi1>, vector<8x256xf32>
    %c0_73 = arith.constant 0 : index
    %c0_74 = arith.constant 0 : index
    %297 = vector.load %arg5[%c0_73, %c0_74] : memref<8x256xf32, #tpu.memory_space<vmem>>, vector<8x256xf32>
    tpu.vector_store %arg5[%c0_73, %c0_74], %296 {strides = array<i32>} : memref<8x256xf32, #tpu.memory_space<vmem>>, vector<8x256xf32>,
    return
  }
  func.func @transform_0(%arg0: i32) -> (i32, i32) {
    %c0_i32 = arith.constant 0 : i32
    %c0_i32_0 = arith.constant 0 : i32
    return %c0_i32, %arg0 : i32, i32
  }
  func.func @transform_1(%arg0: i32) -> (i32, i32) {
    %c0_i32 = arith.constant 0 : i32
    %c0_i32_0 = arith.constant 0 : i32
    %c0_i32_1 = arith.constant 0 : i32
    return %c0_i32, %c0_i32_0 : i32, i32
  }
  func.func @transform_2(%arg0: i32) -> (i32, i32, i32) {
    %c0_i32 = arith.constant 0 : i32
    %c0_i32_0 = arith.constant 0 : i32
    %c0_i32_1 = arith.constant 0 : i32
    %c0_i32_2 = arith.constant 0 : i32
    return %c0_i32, %c0_i32_0, %c0_i32_1 : i32, i32, i32
  }
  func.func @transform_3(%arg0: i32) -> (i32, i32, i32) {
    %c0_i32 = arith.constant 0 : i32
    %c0_i32_0 = arith.constant 0 : i32
    %c0_i32_1 = arith.constant 0 : i32
    %c0_i32_2 = arith.constant 0 : i32
    return %c0_i32, %c0_i32_0, %c0_i32_1 : i32, i32, i32
  }
  func.func @transform_4(%arg0: i32) -> (i32, i32) {
    %c0_i32 = arith.constant 0 : i32
    %c0_i32_0 = arith.constant 0 : i32
    return %c0_i32, %arg0 : i32, i32
  }
}

</mosaic_0001>

<llo_original>
// kernel: conv_block_forward.1
$region0: #{conv_block_forward.1}
  #allocation0 [shape = 'u32[]', space=smem, size = 0x4, offset = 0x4, fixed_abs, tag = 'smem constant byte address 0x4 - core index']
  #allocation1 [shape = 'u32[72,128]{1,0:T(1,128)}', space=vmem, size = 0x9000, scoped, tag = 'internal scratch']
  %s0 = inlined_call_operand.vmem [shape: f32[8,512], index: 0, kind: input, shape index: {}]
  %s1 = inlined_call_operand.vmem [shape: f32[8,72], index: 1, kind: input, shape index: {}]
  %s2 = inlined_call_operand.vmem [shape: f32[1,8,72], index: 2, kind: input, shape index: {}]
  %s3 = inlined_call_operand.vmem [shape: f32[2,24,1], index: 3, kind: input, shape index: {}]
  %s4 = inlined_call_operand.vmem [shape: f32[8,512], index: 4, kind: output, shape index: {}]
  %s5 = sld [smem:[#allocation0]]
  $region49: #{conv_block_forward.1} parent=0
    _
  %s7 = ssub.s32 1, %s5
  %s8 = scalar_select 0, %s7, %s5
  loop: start=0, step=1, limit=4
  $region2: #{conv_block_forward.1} parent=0 // loop_pre_header
    _
  $region3: #{conv_block_forward.1} parent=0 // loop_header
    %s10 = sphi 0, %s14
    %p11 = scmp.ge.s32.totalorder %s10, 4
    %s20 = sphi 0, %s22
    %s23 = sphi 0, %s20
    %s24 = sphi 0, %s23
    %s40 = sphi 0, %s24
    %s44 = sphi 0, %s44
    %s46 = sphi 0, %s44
    %s47 = sphi 0, %s46
    %s61 = sphi 0, %s47
    %s65 = sphi 0, %s65
    %s67 = sphi 0, %s65
    %s68 = sphi 0, %s67
    %s82 = sphi 0, %s68
    %s86 = sphi 0, %s86
    %s88 = sphi 0, %s86
    %s89 = sphi 0, %s88
    %s103 = sphi 0, %s89
    %s109 = sphi 0, %s111
    %s112 = sphi 0, %s109
    %s113 = sphi 0, %s112
    %s129 = sphi 0, %s113
  $region4: #{conv_block_forward.1} parent=0 // loop_header_branch
    %13 = sbr.rel (%p11) target = $region8
  $region5: #{conv_block_forward.1} parent=0 // loop_body
    %s15 = ssub.s32 %s10, 1
    %s16 = ssub.s32 %s10, 2
    %s17 = sadd.s32 %s10, 1
    %s18 = ssub.s32 %s10, %s17
    %p19 = scmp.eq.s32.totalorder %s18, 0
    %s21 = sadd.s32 %s20, 1
    %s22 = scalar_select %p19, %s20, %s21
    %p25 = pneg %p19
    %p26 = scmp.eq.s32.totalorder %s10, 1
    %p27 = por %p25, %p26
    %p28 = scmp.ne.s32.totalorder %s20, %s23
    %p29 = scmp.eq.s32.totalorder %s10, 0
    %p30 = por %p28, %p29
    %p31 = scmp.ne.s32.totalorder %s20, %s23
    %p32 = scmp.eq.s32.totalorder %s15, 1
    %p33 = por %p31, %p32
    %p34 = scmp.ne.s32.totalorder %s23, %s24
    %p35 = scmp.eq.s32.totalorder %s15, 0
    %p36 = por %p34, %p35
    %p37 = scmp.ne.s32.totalorder %s23, %s24
    %p38 = scmp.eq.s32.totalorder %s16, 1
    %p39 = por %p37, %p38
    %p41 = scmp.ne.s32.totalorder %s24, %s40
    %p42 = scmp.eq.s32.totalorder %s16, 0
    %p43 = por %p41, %p42
    %s45 = sadd.s32 %s44, 1
    %p48 = scmp.eq.s32.totalorder %s10, 1
    %p49 = scmp.ne.s32.totalorder %s44, %s46
    %p50 = scmp.eq.s32.totalorder %s10, 0
    %p51 = por %p49, %p50
    %p52 = scmp.ne.s32.totalorder %s44, %s46
    %p53 = scmp.eq.s32.totalorder %s15, 1
    %p54 = por %p52, %p53
    %p55 = scmp.ne.s32.totalorder %s46, %s47
    %p56 = scmp.eq.s32.totalorder %s15, 0
    %p57 = por %p55, %p56
    %p58 = scmp.ne.s32.totalorder %s46, %s47
    %p59 = scmp.eq.s32.totalorder %s16, 1
    %p60 = por %p58, %p59
    %p62 = scmp.ne.s32.totalorder %s47, %s61
    %p63 = scmp.eq.s32.totalorder %s16, 0
    %p64 = por %p62, %p63
    %s66 = sadd.s32 %s65, 1
    %p69 = scmp.eq.s32.totalorder %s10, 1
    %p70 = scmp.ne.s32.totalorder %s65, %s67
    %p71 = scmp.eq.s32.totalorder %s10, 0
    %p72 = por %p70, %p71
    %p73 = scmp.ne.s32.totalorder %s65, %s67
    %p74 = scmp.eq.s32.totalorder %s15, 1
    %p75 = por %p73, %p74
    %p76 = scmp.ne.s32.totalorder %s67, %s68
    %p77 = scmp.eq.s32.totalorder %s15, 0
    %p78 = por %p76, %p77
    %p79 = scmp.ne.s32.totalorder %s67, %s68
    %p80 = scmp.eq.s32.totalorder %s16, 1
    %p81 = por %p79, %p80
    %p83 = scmp.ne.s32.totalorder %s68, %s82
    %p84 = scmp.eq.s32.totalorder %s16, 0
    %p85 = por %p83, %p84
    %s87 = sadd.s32 %s86, 1
    %p90 = scmp.eq.s32.totalorder %s10, 1
    %p91 = scmp.ne.s32.totalorder %s86, %s88
    %p92 = scmp.eq.s32.totalorder %s10, 0
    %p93 = por %p91, %p92
    %p94 = scmp.ne.s32.totalorder %s86, %s88
    %p95 = scmp.eq.s32.totalorder %s15, 1
    %p96 = por %p94, %p95
    %p97 = scmp.ne.s32.totalorder %s88, %s89
    %p98 = scmp.eq.s32.totalorder %s15, 0
    %p99 = por %p97, %p98
    %p100 = scmp.ne.s32.totalorder %s88, %s89
    %p101 = scmp.eq.s32.totalorder %s16, 1
    %p102 = por %p100, %p101
    %p104 = scmp.ne.s32.totalorder %s89, %s103
    %p105 = scmp.eq.s32.totalorder %s16, 0
    %p106 = por %p104, %p105
    %s107 = ssub.s32 %s10, %s17
    %p108 = scmp.eq.s32.totalorder %s107, 0
    %s110 = sadd.s32 %s109, 1
    %s111 = scalar_select %p108, %s109, %s110
    %p114 = pneg %p108
    %p115 = scmp.eq.s32.totalorder %s10, 1
    %p116 = por %p114, %p115
    %p117 = scmp.ne.s32.totalorder %s109, %s112
    %p118 = scmp.eq.s32.totalorder %s10, 0
    %p119 = por %p117, %p118
    %p120 = scmp.ne.s32.totalorder %s109, %s112
    %p121 = scmp.eq.s32.totalorder %s15, 1
    %p122 = por %p120, %p121
    %p123 = scmp.ne.s32.totalorder %s112, %s113
    %p124 = scmp.eq.s32.totalorder %s15, 0
    %p125 = por %p123, %p124
    %p126 = scmp.ne.s32.totalorder %s112, %s113
    %p127 = scmp.eq.s32.totalorder %s16, 1
    %p128 = por %p126, %p127
    %p130 = scmp.ne.s32.totalorder %s113, %s129
    %p131 = scmp.eq.s32.totalorder %s16, 0
    %p132 = por %p130, %p131
    %p133 = scmp.le.s32.totalorder 1, %s10
    %p134 = scmp.lt.s32.totalorder %s10, 3
    %p135 = pnand %p133, %p134
    %p136 = pneg %p135
    // Predicated region
    $region9: #{conv_block_forward.1} parent=5 // pred_check
      _
    $region10: #{conv_block_forward.1} parent=5 // pred_check_branch
      %138 = sbr.rel (%p135) target = $region12
    $region11: #{conv_block_forward.1} parent=5 // pred_region
      %s139 = ssub.s32 %s10, 1
      // Predicated region
      $region13: #{conv_block_forward.1} parent=11 // pred_check
        %p140 = pneg %p57
      $region14: #{conv_block_forward.1} parent=11 // pred_check_branch
        %142 = sbr.rel (%p140) target = $region16
      $region15: #{conv_block_forward.1} parent=11 // pred_region
        _
      $region16: #{conv_block_forward.1} parent=11 // pred_fallthru
        _
      // Predicated region
      $region17: #{conv_block_forward.1} parent=11 // pred_check
        %p143 = pneg %p78
      $region18: #{conv_block_forward.1} parent=11 // pred_check_branch
        %145 = sbr.rel (%p143) target = $region20
      $region19: #{conv_block_forward.1} parent=11 // pred_region
        _
      $region20: #{conv_block_forward.1} parent=11 // pred_fallthru
        _
      // Predicated region
      $region21: #{conv_block_forward.1} parent=11 // pred_check
        %p146 = pneg %p99
      $region22: #{conv_block_forward.1} parent=11 // pred_check_branch
        %148 = sbr.rel (%p146) target = $region24
      $region23: #{conv_block_forward.1} parent=11 // pred_region
        _
      $region24: #{conv_block_forward.1} parent=11 // pred_fallthru
        _
    $region12: #{conv_block_forward.1} parent=5 // pred_fallthru
      _
    %p149 = scmp.lt.s32.totalorder %s10, 2
    // Predicated region
    $region25: #{conv_block_forward.1} parent=5 // pred_check
      %p150 = pneg %p149
    $region26: #{conv_block_forward.1} parent=5 // pred_check_branch
      %152 = sbr.rel (%p150) target = $region28
    $region27: #{conv_block_forward.1} parent=5 // pred_region
      // Predicated region
      $region29: #{conv_block_forward.1} parent=27 // pred_check
        %p153 = pneg %p30
      $region30: #{conv_block_forward.1} parent=27 // pred_check_branch
        %155 = sbr.rel (%p153) target = $region32
      $region31: #{conv_block_forward.1} parent=27 // pred_region
        %s156 = smul.u32 2, %s10
        %p157 = scmp.lt.s32.totalorder %s156, 3
        %s158 = scalar_select %p157, %s156, 3
        %s159 = smul.addr %s158, 8
        %s160 = scalar_lea.vmem %s0, %s159
        %s161 = smul.u32 2, %s10
      $region32: #{conv_block_forward.1} parent=27 // pred_fallthru
        _
    $region28: #{conv_block_forward.1} parent=5 // pred_fallthru
      _
    %p162 = scmp.le.s32.totalorder 1, %s10
    %p163 = scmp.lt.s32.totalorder %s10, 3
    %p164 = pnand %p162, %p163
    %p165 = pneg %p164
    // Predicated region
    $region33: #{conv_block_forward.1} parent=5 // pred_check
      _
    $region34: #{conv_block_forward.1} parent=5 // pred_check_branch
      %167 = sbr.rel (%p164) target = $region36
    $region35: #{conv_block_forward.1} parent=5 // pred_region
      %s168 = ssub.s32 %s10, 1
      %s169 = smul.u32 2, %s15
      %p170 = scmp.lt.s32.totalorder %s169, 3
      %s171 = scalar_select %p170, %s169, 3
      %s172 = smul.addr %s171, 8
      %s173 = scalar_lea.vmem %s0, %s172
      %p174 = pneg %p36
      %p175 = pneg %p33
      %p176 = pneg %p57
      %p177 = pneg %p54
      %p178 = pneg %p78
      %p179 = pneg %p75
      %p180 = pneg %p99
      %p181 = pneg %p96
      %p182 = pneg %p125
      %p183 = pneg %p122
      %s184 = smul.u32 2, %s15
      %p185 = scmp.lt.s32.totalorder %s184, 3
      %s186 = scalar_select %p185, %s184, 3
      %s187 = smul.addr %s186, 8
      %s188 = scalar_lea.vmem %s4, %s187
      %s189 = smul.u32 2, %s15
      %p190 = scmp.lt.s32.totalorder %s189, 3
      %s191 = scalar_select %p190, %s189, 3
      %s192 = smul.addr %s191, 8
      %s193 = scalar_lea.vmem %s0, %s192
      %s194 = smul.u32 2, %s15
      %s195 = smul.u32 2, %s15
      %p196 = scmp.lt.s32.totalorder %s195, 3
      %s197 = scalar_select %p196, %s195, 3
      %s198 = smul.addr %s197, 8
      %s199 = scalar_lea.vmem %s4, %s198
      %s200 = smul.u32 2, %s15
      %v201 = vlaneseq
      %v202 = vand.u32 %v201, 127
      %v203 = vadd.s32 %v202, 128
      %v204 = vand.u32 %v202, 255
      %v205 = vand.u32 %v203, 255
      %v206 = vand.u32 %v204, 15
      %v207 = vand.u32 %v205, 15
      %vm208 = vcmp.ge.s32.totalorder %v204, 16
      %vm209 = vcmp.ge.s32.totalorder %v205, 16
      %vm210 = vcmp.lt.s32.totalorder %v204, 272
      %vm211 = vcmp.lt.s32.totalorder %v205, 272
      %vm212 = vmand %vm208, %vm210
      %vm213 = vmand %vm209, %vm211
      %vm214 = vcmp.ge.s32.totalorder %v206, 1
      %vm215 = vcmp.ge.s32.totalorder %v207, 1
      %vm216 = vcmp.lt.s32.totalorder %v206, 17
      %vm217 = vcmp.lt.s32.totalorder %v207, 17
      %vm218 = vmand %vm214, %vm216
      %vm219 = vmand %vm215, %vm217
      %vm220 = vmand %vm212, %vm218
      %vm221 = vmand %vm213, %vm219
      %vm222 = vcmp.ge.s32.totalorder %v206, 0
      %vm223 = vcmp.ge.s32.totalorder %v207, 0
      %vm224 = vcmp.lt.s32.totalorder %v206, 16
      %vm225 = vcmp.lt.s32.totalorder %v207, 16
      %vm226 = vmand %vm222, %vm224
      %vm227 = vmand %vm223, %vm225
      %vm228 = vmand %vm212, %vm226
      %vm229 = vmand %vm213, %vm227
      %vm230 = vcmp.ge.s32.totalorder %v206, 4294967295
      %vm231 = vcmp.ge.s32.totalorder %v207, 4294967295
      %vm232 = vcmp.lt.s32.totalorder %v206, 15
      %vm233 = vcmp.lt.s32.totalorder %v207, 15
      %vm234 = vmand %vm230, %vm232
      %vm235 = vmand %vm231, %vm233
      %vm236 = vmand %vm212, %vm234
      %vm237 = vmand %vm213, %vm235
      %vm238 = vcmp.ge.s32.totalorder %v204, 0
      %vm239 = vcmp.ge.s32.totalorder %v205, 0
      %vm240 = vcmp.lt.s32.totalorder %v204, 256
      %vm241 = vcmp.lt.s32.totalorder %v205, 256
      %vm242 = vmand %vm238, %vm240
      %vm243 = vmand %vm239, %vm241
      %vm244 = vmand %vm242, %vm218
      %vm245 = vmand %vm243, %vm219
      %vm246 = vmand %vm242, %vm234
      %vm247 = vmand %vm243, %vm235
      %vm248 = vcmp.ge.s32.totalorder %v204, 4294967280
      %vm249 = vcmp.ge.s32.totalorder %v205, 4294967280
      %vm250 = vcmp.lt.s32.totalorder %v204, 240
      %vm251 = vcmp.lt.s32.totalorder %v205, 240
      %vm252 = vmand %vm248, %vm250
      %vm253 = vmand %vm249, %vm251
      %vm254 = vmand %vm252, %vm218
      %vm255 = vmand %vm253, %vm219
      %vm256 = vmand %vm252, %vm226
      %vm257 = vmand %vm253, %vm227
      %vm258 = vmand %vm252, %vm234
      %vm259 = vmand %vm253, %vm235
      %v260 = vld [vmem:[%s193] sm:$0xff]
      %v261 = vld [vmem:[%s193 + $0x8] sm:$0xff]
      %v262 = vld [vmem:[%s1] sm:$0xff]
      %v263 = vld [vmem:[%s3] sm:$0xff]
      %v264 = vld [vmem:[%s3 + $0x8] sm:$0xff]
      %v265 = vld [vmem:[%s3 + $0x10] sm:$0xff]
      %267 = vrot.lane.b32.xlu0 %v261, 17
      %v268 = vpop.permute.xlu0 %267
      %271 = vrot.lane.b32.xlu0 %v260, 17
      %v272 = vpop.permute.xlu0 %271
      %vm273 = vcmask 138240
      %v274 = vsel %vm273, %v272, %v268
      %v277 = vsel %vm273, %v268, %v272
      %v278 = vsel %vm220, 1, 0
      %v279 = vsel %vm221, 1, 0
      %vm280 = vcmp.eq.s32.totalorder %v278, 1
      %vm281 = vcmp.eq.s32.totalorder %v279, 1
      %v282 = vsel %vm280, %v277, 0.0
      %v283 = vsel %vm281, %v274, 0.0
      %284 = vrot.lane.b32.xlu0 %v261, 16
      %v285 = vpop.permute.xlu0 %284
      %287 = vrot.lane.b32.xlu0 %v260, 16
      %v288 = vpop.permute.xlu0 %287
      %vm289 = vcmask 130048
      %v290 = vsel %vm289, %v288, %v285
      %v293 = vsel %vm289, %v285, %v288
      %v294 = vsel %vm228, 1, 0
      %v295 = vsel %vm229, 1, 0
      %vm296 = vcmp.eq.s32.totalorder %v294, 1
      %vm297 = vcmp.eq.s32.totalorder %v295, 1
      %v298 = vsel %vm296, %v293, 0.0
      %v299 = vsel %vm297, %v290, 0.0
      %300 = vrot.lane.b32.xlu0 %v261, 15
      %v301 = vpop.permute.xlu0 %300
      %303 = vrot.lane.b32.xlu0 %v260, 15
      %v304 = vpop.permute.xlu0 %303
      %vm305 = vcmask 121856
      %v306 = vsel %vm305, %v304, %v301
      %v309 = vsel %vm305, %v301, %v304
      %v310 = vsel %vm236, 1, 0
      %v311 = vsel %vm237, 1, 0
      %vm312 = vcmp.eq.s32.totalorder %v310, 1
      %vm313 = vcmp.eq.s32.totalorder %v311, 1
      %v314 = vsel %vm312, %v309, 0.0
      %v315 = vsel %vm313, %v306, 0.0
      %316 = vrot.lane.b32.xlu0 %v261, 1
      %v317 = vpop.permute.xlu0 %316
      %319 = vrot.lane.b32.xlu0 %v260, 1
      %v320 = vpop.permute.xlu0 %319
      %vm321 = vcmask 7168
      %v322 = vsel %vm321, %v320, %v317
      %v325 = vsel %vm321, %v317, %v320
      %v326 = vsel %vm244, 1, 0
      %v327 = vsel %vm245, 1, 0
      %vm328 = vcmp.eq.s32.totalorder %v326, 1
      %vm329 = vcmp.eq.s32.totalorder %v327, 1
      %v330 = vsel %vm328, %v325, 0.0
      %v331 = vsel %vm329, %v322, 0.0
      %332 = vrot.lane.b32.xlu0 %v260, 127
      %v333 = vpop.permute.xlu0 %332
      %334 = vrot.lane.b32.xlu0 %v261, 127
      %v335 = vpop.permute.xlu0 %334
      %vm336 = vcmask 1039360
      %v337 = vsel %vm336, %v333, %v335
      %v341 = vsel %vm336, %v335, %v333
      %v342 = vsel %vm246, 1, 0
      %v343 = vsel %vm247, 1, 0
      %vm344 = vcmp.eq.s32.totalorder %v342, 1
      %vm345 = vcmp.eq.s32.totalorder %v343, 1
      %v346 = vsel %vm344, %v337, 0.0
      %v347 = vsel %vm345, %v341, 0.0
      %348 = vrot.lane.b32.xlu0 %v260, 113
      %v349 = vpop.permute.xlu0 %348
      %350 = vrot.lane.b32.xlu0 %v261, 113
      %v351 = vpop.permute.xlu0 %350
      %vm352 = vcmask 924672
      %v353 = vsel %vm352, %v349, %v351
      %v357 = vsel %vm352, %v351, %v349
      %v358 = vsel %vm254, 1, 0
      %v359 = vsel %vm255, 1, 0
      %vm360 = vcmp.eq.s32.totalorder %v358, 1
      %vm361 = vcmp.eq.s32.totalorder %v359, 1
      %v362 = vsel %vm360, %v353, 0.0
      %v363 = vsel %vm361, %v357, 0.0
      %364 = vrot.lane.b32.xlu0 %v260, 112
      %v365 = vpop.permute.xlu0 %364
      %366 = vrot.lane.b32.xlu0 %v261, 112
      %v367 = vpop.permute.xlu0 %366
      %vm368 = vcmask 916480
      %v369 = vsel %vm368, %v365, %v367
      %v373 = vsel %vm368, %v367, %v365
      %v374 = vsel %vm256, 1, 0
      %v375 = vsel %vm257, 1, 0
      %vm376 = vcmp.eq.s32.totalorder %v374, 1
      %vm377 = vcmp.eq.s32.totalorder %v375, 1
      %v378 = vsel %vm376, %v369, 0.0
      %v379 = vsel %vm377, %v373, 0.0
      %380 = vrot.lane.b32.xlu0 %v260, 111
      %v381 = vpop.permute.xlu0 %380
      %382 = vrot.lane.b32.xlu0 %v261, 111
      %v383 = vpop.permute.xlu0 %382
      %vm384 = vcmask 908288
      %v385 = vsel %vm384, %v381, %v383
      %v389 = vsel %vm384, %v383, %v381
      %v390 = vsel %vm258, 1, 0
      %v391 = vsel %vm259, 1, 0
      %vm392 = vcmp.eq.s32.totalorder %v390, 1
      %vm393 = vcmp.eq.s32.totalorder %v391, 1
      %v394 = vsel %vm392, %v385, 0.0
      %v395 = vsel %vm393, %v389, 0.0
      %397 = vset.pattern.permute.xlu0 0
      %398 = vperm.xlu0 %397, %v263
      %v399 = vpop.permute.xlu0 %398
      %vm401 = vcmask 588800
      %v403 = vsel %vm401, %v262, 0
      %405 = vmatpush.msra.mxu0 0.0
      %406 = vmatpush.msra.mxu0 0.0
      %407 = vmatpush.msra.mxu0 0.0
      %408 = vmatpush.msra.mxu0 0.0
      %409 = vmatpush.msra.mxu0 0.0
      %410 = vmatpush.msra.mxu0 0.0
      %411 = vmatpush.msra.mxu0 0.0
      %412 = vmatpush.msra.mxu0 %v394
      %413 = vmatpush.msra.mxu0 %v378
      %414 = vmatpush.msra.mxu0 %v362
      %415 = vmatpush.msra.mxu0 %v346
      %416 = vmatpush.msra.mxu0 %v260
      %417 = vmatpush.msra.mxu0 %v330
      %418 = vmatpush.msra.mxu0 %v314
      %419 = vmatpush.msra.mxu0 %v298
      %420 = vmatpush.msra.mxu0 %v282
      %421 = vmatmul.f32.gmra.mxu0 %v403
      %v422 = vpop.f32.mrf.mxu0
      %v423 = vadd.f32 %v399, %v422
      %424 = vdwg.mxu0
      %425 = vmatpush.msra.mxu0 0.0
      %426 = vmatpush.msra.mxu0 0.0
      %427 = vmatpush.msra.mxu0 0.0
      %428 = vmatpush.msra.mxu0 0.0
      %429 = vmatpush.msra.mxu0 0.0
      %430 = vmatpush.msra.mxu0 0.0
      %431 = vmatpush.msra.mxu0 0.0
      %432 = vmatpush.msra.mxu0 %v395
      %433 = vmatpush.msra.mxu0 %v379
      %434 = vmatpush.msra.mxu0 %v363
      %435 = vmatpush.msra.mxu0 %v347
      %436 = vmatpush.msra.mxu0 %v261
      %437 = vmatpush.msra.mxu0 %v331
      %438 = vmatpush.msra.mxu0 %v315
      %439 = vmatpush.msra.mxu0 %v299
      %440 = vmatpush.msra.mxu0 %v283
      %441 = vmatmul.f32.gmra.mxu0 %v403
      %v442 = vpop.f32.mrf.mxu0
      %v443 = vadd.f32 %v399, %v442
      %444 = vdwg.mxu0
      %v445 = vadd.f32 %v423, %v443
      %446 = vadd.xlane.f32.xlu0 %v445
      %v447 = vpop.xlane.xlu0 %446
      %v448 = vmul.f32 %v423, %v423
      %v449 = vmul.f32 %v443, %v443
      %v450 = vadd.f32 %v448, %v449
      %451 = vadd.xlane.f32.xlu0 %v450
      %v452 = vpop.xlane.xlu0 %451
      %v453 = vsel %vm321, %v447, 0.0
      %454 = vadd.xlane.f32.xlu0 %v453
      %v455 = vpop.xlane.xlu0 %454
      %v456 = vrot.slane %v455, 4
      %v457 = vadd.f32 %v455, %v456
      %v458 = vrot.slane %v457, 2
      %v459 = vadd.f32 %v457, %v458
      %v460 = vrot.slane %v459, 1
      %v461 = vadd.f32 %v459, %v460
      %s462 = vtos %v461
      %v463 = vsel %vm321, %v452, 0.0
      %464 = vadd.xlane.f32.xlu0 %v463
      %v465 = vpop.xlane.xlu0 %464
      %v466 = vrot.slane %v465, 4
      %v467 = vadd.f32 %v465, %v466
      %v468 = vrot.slane %v467, 2
      %v469 = vadd.f32 %v467, %v468
      %v470 = vrot.slane %v469, 1
      %v471 = vadd.f32 %v469, %v470
      %s472 = vtos %v471
      %v473 = vrcp.pop 2048.0
      %v474 = vmul.f32 2048.0, %v473
      %v475 = vsub.f32 1.0, %v474
      %v476 = vmul.f32 %v473, %v475
      %v477 = vadd.f32 %v473, %v476
      %vm478 = vweird.f32 %v473
      %v479 = vsel %vm478, %v473, %v477
      %s480 = vtos %v479
      %s481 = smul.f32 %s462, %s480
      %s482 = smul.f32 %s462, %s481
      %s483 = ssub.f32 %s472, %s482
      %v484 = vrcp.pop 2047.0
      %v485 = vmul.f32 2047.0, %v484
      %v486 = vsub.f32 1.0, %v485
      %v487 = vmul.f32 %v484, %v486
      %v488 = vadd.f32 %v484, %v487
      %vm489 = vweird.f32 %v484
      %v490 = vsel %vm489, %v484, %v488
      %s491 = vtos %v490
      %s492 = smul.f32 %s483, %s491
      %s493 = smax.f32 %s492, 0.0
      %v494 = vstv %s493
      %v495 = vrsqrt.pop %v494
      %v496 = vmul.f32 %v495, %v494
      %v497 = vmul.f32 %v496, %v495
      %v498 = vmul.f32 0.5, %v497
      %v499 = vsub.f32 1.5, %v498
      %v500 = vmul.f32 %v495, %v499
      %v501 = vmul.f32 %v494, %v500
      %vm502 = vcmp.eq.f32.partialorder %v494, inf
      %v503 = vsel %vm502, %v494, %v501
      %vm504 = vcmp.eq.f32.partialorder %v494, 0.0
      %v505 = vand.u32 %v494, 2147483648
      %v506 = vsel %vm504, %v505, %v503
      %s507 = vtos %v506
      %s508 = sadd.f32 %s507, 1e-05
      %v509 = vstv %s508
      %v510 = vrcp.pop %v509
      %v511 = vmul.f32 %v509, %v510
      %v512 = vsub.f32 1.0, %v511
      %v513 = vmul.f32 %v510, %v512
      %v514 = vadd.f32 %v510, %v513
      %vm515 = vweird.f32 %v509
      %vm516 = vweird.f32 %v510
      %vm517 = vmor %vm515, %vm516
      %v518 = vsel %vm517, %v510, %v514
      %v519 = vand.u32 2147483647, %v509
      %vm520 = vcmp.eq.f32.partialorder %v519, 8.507059e+37
      %v521 = vand.u32 %v509, 2147483648
      %v522 = vor.u32 1.1754944e-38, %v521
      %v523 = vsel %vm520, %v522, %v518
      %s524 = vtos %v523
      %v525 = vstv %s524
      %v526 = vmul.f32 %v525, %v264
      %v527 = vstv %s481
      %v528 = vmul.f32 %v527, %v526
      %v529 = vsub.f32 %v265, %v528
      %531 = vset.pattern.permute.xlu0 0
      %532 = vperm.xlu0 %531, %v526
      %v533 = vpop.permute.xlu0 %532
      %v535 = vmul.f32 %v423, %v533
      %v536 = vmul.f32 %v443, %v533
      %538 = vset.pattern.permute.xlu0 0
      %539 = vperm.xlu0 %538, %v529
      %v540 = vpop.permute.xlu0 %539
      %v542 = vadd.f32 %v535, %v540
      %v543 = vadd.f32 %v536, %v540
      %vm544 = vcmp.gt.f32.partialorder %v542, 0.0
      %vm545 = vcmp.gt.f32.partialorder %v543, 0.0
      %v546 = vmul.f32 %v542, 0.01
      %v547 = vmul.f32 %v543, 0.01
      %v548 = vsel %vm544, %v542, %v546
      %v549 = vsel %vm545, %v543, %v547
      %v550 = vld [vmem:[%s2] sm:$0xff]
      %s551 = scalar_lea.vmem %s3, 24
      %v552 = vld [vmem:[%s551] sm:$0xff]
      %v553 = vld [vmem:[%s551 + $0x8] sm:$0xff]
      %v554 = vld [vmem:[%s551 + $0x10] sm:$0xff]
      %556 = vrot.lane.b32.xlu0 %v549, 17
      %v557 = vpop.permute.xlu0 %556
      %560 = vrot.lane.b32.xlu0 %v548, 17
      %v561 = vpop.permute.xlu0 %560
      %v562 = vsel %vm273, %v561, %v557
      %v565 = vsel %vm273, %v557, %v561
      %v566 = vsel %vm280, %v565, 0.0
      %v567 = vsel %vm281, %v562, 0.0
      %568 = vrot.lane.b32.xlu0 %v549, 16
      %v569 = vpop.permute.xlu0 %568
      %571 = vrot.lane.b32.xlu0 %v548, 16
      %v572 = vpop.permute.xlu0 %571
      %v573 = vsel %vm289, %v572, %v569
      %v576 = vsel %vm289, %v569, %v572
      %v577 = vsel %vm296, %v576, 0.0
      %v578 = vsel %vm297, %v573, 0.0
      %579 = vrot.lane.b32.xlu0 %v549, 15
      %v580 = vpop.permute.xlu0 %579
      %582 = vrot.lane.b32.xlu0 %v548, 15
      %v583 = vpop.permute.xlu0 %582
      %v584 = vsel %vm305, %v583, %v580
      %v587 = vsel %vm305, %v580, %v583
      %v588 = vsel %vm312, %v587, 0.0
      %v589 = vsel %vm313, %v584, 0.0
      %590 = vrot.lane.b32.xlu0 %v549, 1
      %v591 = vpop.permute.xlu0 %590
      %593 = vrot.lane.b32.xlu0 %v548, 1
      %v594 = vpop.permute.xlu0 %593
      %v595 = vsel %vm321, %v594, %v591
      %v598 = vsel %vm321, %v591, %v594
      %v599 = vsel %vm328, %v598, 0.0
      %v600 = vsel %vm329, %v595, 0.0
      %601 = vrot.lane.b32.xlu0 %v548, 127
      %v602 = vpop.permute.xlu0 %601
      %603 = vrot.lane.b32.xlu0 %v549, 127
      %v604 = vpop.permute.xlu0 %603
      %v605 = vsel %vm336, %v602, %v604
      %v609 = vsel %vm336, %v604, %v602
      %v610 = vsel %vm344, %v605, 0.0
      %v611 = vsel %vm345, %v609, 0.0
      %612 = vrot.lane.b32.xlu0 %v548, 113
      %v613 = vpop.permute.xlu0 %612
      %614 = vrot.lane.b32.xlu0 %v549, 113
      %v615 = vpop.permute.xlu0 %614
      %v616 = vsel %vm352, %v613, %v615
      %v620 = vsel %vm352, %v615, %v613
      %v621 = vsel %vm360, %v616, 0.0
      %v622 = vsel %vm361, %v620, 0.0
      %623 = vrot.lane.b32.xlu0 %v548, 112
      %v624 = vpop.permute.xlu0 %623
      %625 = vrot.lane.b32.xlu0 %v549, 112
      %v626 = vpop.permute.xlu0 %625
      %v627 = vsel %vm368, %v624, %v626
      %v631 = vsel %vm368, %v626, %v624
      %v632 = vsel %vm376, %v627, 0.0
      %v633 = vsel %vm377, %v631, 0.0
      %634 = vrot.lane.b32.xlu0 %v548, 111
      %v635 = vpop.permute.xlu0 %634
      %636 = vrot.lane.b32.xlu0 %v549, 111
      %v637 = vpop.permute.xlu0 %636
      %v638 = vsel %vm384, %v635, %v637
      %v642 = vsel %vm384, %v637, %v635
      %v643 = vsel %vm392, %v638, 0.0
      %v644 = vsel %vm393, %v642, 0.0
      %646 = vset.pattern.permute.xlu0 0
      %647 = vperm.xlu0 %646, %v552
      %v648 = vpop.permute.xlu0 %647
      %v651 = vsel %vm401, %v550, 0
      %653 = vmatpush.msra.mxu0 0.0
      %654 = vmatpush.msra.mxu0 0.0
      %655 = vmatpush.msra.mxu0 0.0
      %656 = vmatpush.msra.mxu0 0.0
      %657 = vmatpush.msra.mxu0 0.0
      %658 = vmatpush.msra.mxu0 0.0
      %659 = vmatpush.msra.mxu0 0.0
      %660 = vmatpush.msra.mxu0 %v643
      %661 = vmatpush.msra.mxu0 %v632
      %662 = vmatpush.msra.mxu0 %v621
      %663 = vmatpush.msra.mxu0 %v610
      %664 = vmatpush.msra.mxu0 %v548
      %665 = vmatpush.msra.mxu0 %v599
      %666 = vmatpush.msra.mxu0 %v588
      %667 = vmatpush.msra.mxu0 %v577
      %668 = vmatpush.msra.mxu0 %v566
      %669 = vmatmul.f32.gmra.mxu0 %v651
      %v670 = vpop.f32.mrf.mxu0
      %v671 = vadd.f32 %v648, %v670
      %672 = vdwg.mxu0
      %673 = vmatpush.msra.mxu0 0.0
      %674 = vmatpush.msra.mxu0 0.0
      %675 = vmatpush.msra.mxu0 0.0
      %676 = vmatpush.msra.mxu0 0.0
      %677 = vmatpush.msra.mxu0 0.0
      %678 = vmatpush.msra.mxu0 0.0
      %679 = vmatpush.msra.mxu0 0.0
      %680 = vmatpush.msra.mxu0 %v644
      %681 = vmatpush.msra.mxu0 %v633
      %682 = vmatpush.msra.mxu0 %v622
      %683 = vmatpush.msra.mxu0 %v611
      %684 = vmatpush.msra.mxu0 %v549
      %685 = vmatpush.msra.mxu0 %v600
      %686 = vmatpush.msra.mxu0 %v589
      %687 = vmatpush.msra.mxu0 %v578
      %688 = vmatpush.msra.mxu0 %v567
      %689 = vmatmul.f32.gmra.mxu0 %v651
      %v690 = vpop.f32.mrf.mxu0
      %v691 = vadd.f32 %v648, %v690
      %692 = vdwg.mxu0
      %v693 = vadd.f32 %v671, %v691
      %694 = vadd.xlane.f32.xlu0 %v693
      %v695 = vpop.xlane.xlu0 %694
      %v696 = vmul.f32 %v671, %v671
      %v697 = vmul.f32 %v691, %v691
      %v698 = vadd.f32 %v696, %v697
      %699 = vadd.xlane.f32.xlu0 %v698
      %v700 = vpop.xlane.xlu0 %699
      %v701 = vsel %vm321, %v695, 0.0
      %702 = vadd.xlane.f32.xlu0 %v701
      %v703 = vpop.xlane.xlu0 %702
      %v704 = vrot.slane %v703, 4
      %v705 = vadd.f32 %v703, %v704
      %v706 = vrot.slane %v705, 2
      %v707 = vadd.f32 %v705, %v706
      %v708 = vrot.slane %v707, 1
      %v709 = vadd.f32 %v707, %v708
      %s710 = vtos %v709
      %v711 = vsel %vm321, %v700, 0.0
      %712 = vadd.xlane.f32.xlu0 %v711
      %v713 = vpop.xlane.xlu0 %712
      %v714 = vrot.slane %v713, 4
      %v715 = vadd.f32 %v713, %v714
      %v716 = vrot.slane %v715, 2
      %v717 = vadd.f32 %v715, %v716
      %v718 = vrot.slane %v717, 1
      %v719 = vadd.f32 %v717, %v718
      %s720 = vtos %v719
      %v721 = vrcp.pop 2048.0
      %v722 = vmul.f32 2048.0, %v721
      %v723 = vsub.f32 1.0, %v722
      %v724 = vmul.f32 %v721, %v723
      %v725 = vadd.f32 %v721, %v724
      %vm726 = vweird.f32 %v721
      %v727 = vsel %vm726, %v721, %v725
      %s728 = vtos %v727
      %s729 = smul.f32 %s710, %s728
      %s730 = smul.f32 %s710, %s729
      %s731 = ssub.f32 %s720, %s730
      %v732 = vrcp.pop 2047.0
      %v733 = vmul.f32 2047.0, %v732
      %v734 = vsub.f32 1.0, %v733
      %v735 = vmul.f32 %v732, %v734
      %v736 = vadd.f32 %v732, %v735
      %vm737 = vweird.f32 %v732
      %v738 = vsel %vm737, %v732, %v736
      %s739 = vtos %v738
      %s740 = smul.f32 %s731, %s739
      %s741 = smax.f32 %s740, 0.0
      %v742 = vstv %s741
      %v743 = vrsqrt.pop %v742
      %v744 = vmul.f32 %v743, %v742
      %v745 = vmul.f32 %v744, %v743
      %v746 = vmul.f32 0.5, %v745
      %v747 = vsub.f32 1.5, %v746
      %v748 = vmul.f32 %v743, %v747
      %v749 = vmul.f32 %v742, %v748
      %vm750 = vcmp.eq.f32.partialorder %v742, inf
      %v751 = vsel %vm750, %v742, %v749
      %vm752 = vcmp.eq.f32.partialorder %v742, 0.0
      %v753 = vand.u32 %v742, 2147483648
      %v754 = vsel %vm752, %v753, %v751
      %s755 = vtos %v754
      %s756 = sadd.f32 %s755, 1e-05
      %v757 = vstv %s756
      %v758 = vrcp.pop %v757
      %v759 = vmul.f32 %v757, %v758
      %v760 = vsub.f32 1.0, %v759
      %v761 = vmul.f32 %v758, %v760
      %v762 = vadd.f32 %v758, %v761
      %vm763 = vweird.f32 %v757
      %vm764 = vweird.f32 %v758
      %vm765 = vmor %vm763, %vm764
      %v766 = vsel %vm765, %v758, %v762
      %v767 = vand.u32 2147483647, %v757
      %vm768 = vcmp.eq.f32.partialorder %v767, 8.507059e+37
      %v769 = vand.u32 %v757, 2147483648
      %v770 = vor.u32 1.1754944e-38, %v769
      %v771 = vsel %vm768, %v770, %v766
      %s772 = vtos %v771
      %v773 = vstv %s772
      %v774 = vmul.f32 %v773, %v553
      %v775 = vstv %s729
      %v776 = vmul.f32 %v775, %v774
      %v777 = vsub.f32 %v554, %v776
      %779 = vset.pattern.permute.xlu0 0
      %780 = vperm.xlu0 %779, %v774
      %v781 = vpop.permute.xlu0 %780
      %v783 = vmul.f32 %v671, %v781
      %v784 = vmul.f32 %v691, %v781
      %786 = vset.pattern.permute.xlu0 0
      %787 = vperm.xlu0 %786, %v777
      %v788 = vpop.permute.xlu0 %787
      %v790 = vadd.f32 %v783, %v788
      %v791 = vadd.f32 %v784, %v788
      %vm792 = vcmp.gt.f32.partialorder %v790, 0.0
      %vm793 = vcmp.gt.f32.partialorder %v791, 0.0
      %v794 = vmul.f32 %v790, 0.01
      %v795 = vmul.f32 %v791, 0.01
      %v796 = vsel %vm792, %v790, %v794
      %v797 = vsel %vm793, %v791, %v795
      %798 = vst [vmem:[%s199] sm:$0xff] %v796
      %799 = vst [vmem:[%s199 + $0x8] sm:$0xff] %v797
      %s800 = smul.u32 2, %s15
      %p801 = scmp.lt.s32.totalorder %s800, 3
      %s802 = scalar_select %p801, %s800, 3
      %s803 = smul.addr %s802, 8
      %s804 = scalar_lea.vmem %s4, %s803
      // Predicated region
      $region37: #{conv_block_forward.1} parent=35 // pred_check
        %p805 = pneg %p122
      $region38: #{conv_block_forward.1} parent=35 // pred_check_branch
        %807 = sbr.rel (%p805) target = $region40
      $region39: #{conv_block_forward.1} parent=35 // pred_region
        %s808 = smul.u32 2, %s15
      $region40: #{conv_block_forward.1} parent=35 // pred_fallthru
        _
    $region36: #{conv_block_forward.1} parent=5 // pred_fallthru
      _
    %p809 = scmp.le.s32.totalorder 2, %s10
    // Predicated region
    $region41: #{conv_block_forward.1} parent=5 // pred_check
      %p810 = pneg %p809
    $region42: #{conv_block_forward.1} parent=5 // pred_check_branch
      %812 = sbr.rel (%p810) target = $region44
    $region43: #{conv_block_forward.1} parent=5 // pred_region
      %s813 = ssub.s32 %s10, 2
      // Predicated region
      $region45: #{conv_block_forward.1} parent=43 // pred_check
        %p814 = pneg %p128
      $region46: #{conv_block_forward.1} parent=43 // pred_check_branch
        %816 = sbr.rel (%p814) target = $region48
      $region47: #{conv_block_forward.1} parent=43 // pred_region
        %s817 = smul.u32 2, %s16
        %p818 = scmp.lt.s32.totalorder %s817, 3
        %s819 = scalar_select %p818, %s817, 3
        %s820 = smul.addr %s819, 8
        %s821 = scalar_lea.vmem %s4, %s820
      $region48: #{conv_block_forward.1} parent=43 // pred_fallthru
        _
    $region44: #{conv_block_forward.1} parent=5 // pred_fallthru
      _
  $region6: #{conv_block_forward.1} parent=0 // loop_footer
    %s14 = sadd.s32 1, %s10
  $region7: #{conv_block_forward.1} parent=0 // loop_footer_branch
    %9 = sbr.rel target = $region3
  $region8: #{conv_block_forward.1} parent=0 // loop_exit
    _

</llo_original>
